<compile_context>
chip_gen: v7x
topology: tpu7x:2x2x1
jax: 0.10.0
libtpu: 0.0.40
codegen_flags: <defaults>
</compile_context>

<pallas_src>
import math

import jax
import jax.numpy as jnp
from jax.experimental import pallas as pl
from jax.experimental.pallas import tpu as pltpu

_EPS = 1e-8                     # kornia.color.rgb_to_hsv default eps
_TWO_PI = 2.0 * math.pi
# HSV bounds from ExtractHand.__init__ (hue, saturation, value)
_HSV_MIN = (0.0, 0.0, 0.4)
_HSV_MAX = (_TWO_PI, 0.3, 1.0)

_LANE = 128


def _extract_hand_kernel(x_ref, out_ref):
    """x_ref/out_ref: (1, 3, TILE, 128) lane-dense flattened-pixel planes."""
    # Static ref slices are zero-cost views; avoid materializing the block.
    r = x_ref[0, 0]
    g = x_ref[0, 1]
    b = x_ref[0, 2]

    # --- kornia.color.rgb_to_hsv, reduced to the parts the mask uses ---
    maxc = jnp.maximum(jnp.maximum(r, g), b)
    minc = jnp.minimum(jnp.minimum(r, g), b)
    delta = maxc - minc

    # Hue bounds are [0, 2*pi] and kornia's hue lies in [0, 2*pi) for finite
    # inputs, so the hue test is always true -> the whole hue path is dropped.
    #
    # Saturation test without the divide:
    #   s = delta / (maxc + eps) <= 0.3   <=>   delta <= 0.3 * (maxc + eps)
    # (s >= 0 is trivially true since delta >= 0 and maxc + eps > 0).
    in_s = delta <= (maxc + _EPS) * _HSV_MAX[1]
    in_v = (maxc >= _HSV_MIN[2]) & (maxc <= _HSV_MAX[2])
    hand = in_s & in_v                       # pixels inside the HSV box -> zeroed

    zero = jnp.zeros((), r.dtype)
    out_ref[0, 0] = jnp.where(hand, zero, r)
    out_ref[0, 1] = jnp.where(hand, zero, g)
    out_ref[0, 2] = jnp.where(hand, zero, b)


def _round_up(x, m):
    return -(-x // m) * m


def _largest_aligned_divisor(rows, cap, align):
    """Largest multiple of `align` dividing `rows` that is <= cap (rows % align == 0)."""
    units = rows // align
    cap_units = max(1, cap // align)
    for d in range(min(units, cap_units), 0, -1):
        if units % d == 0:
            return d * align
    return align


def extract_hand(img, *, tile_rows=2048):
    """img: (B, 3, H, W) float RGB in [0, 1]. Returns img with hand region zeroed."""
    B, C, H, W = img.shape
    assert C == 3, "ExtractHand expects RGB input (3 channels)"

    itemsize = jnp.dtype(img.dtype).itemsize
    sub = max(8, 32 // max(1, itemsize))     # 8 for f32, 16 for bf16, 32 for 8-bit

    n = H * W
    rows = _round_up(_round_up(n, _LANE) // _LANE, sub)   # 128-wide rows, sublane-aligned
    cap = _round_up(min(tile_rows, rows), sub)

    # Prefer a tile that divides rows exactly -> no padding, no output slice.
    tile = _largest_aligned_divisor(rows, cap, sub)
    rows_pad = rows
    min_steps = -(-rows // cap)
    if rows // tile > 4 * min_steps:
        # Exact-divisor tiling would need far too many tiny grid steps; pad
        # instead (padded pixels are zero -> v=0 < 0.4 -> never "hand").
        tile = cap
        rows_pad = _round_up(rows, tile)

    # v7x megacore: make sure there are >= 2 grid programs when possible.
    if B * (rows_pad // tile) < 2:
        half = _largest_aligned_divisor(rows_pad, max(sub, tile // 2), sub)
        if rows_pad // half > rows_pad // tile:
            tile = half

    n_pad = rows_pad * _LANE

    flat = img.reshape(B, C, n)
    if n_pad != n:
        flat = jnp.pad(flat, ((0, 0), (0, 0), (0, n_pad - n)))
    x = flat.reshape(B, C, rows_pad, _LANE)

    spec = pl.BlockSpec((1, C, tile, _LANE), lambda bi, ti: (bi, 0, ti, 0))

    out = pl.pallas_call(
        _extract_hand_kernel,
        out_shape=jax.ShapeDtypeStruct((B, C, rows_pad, _LANE), img.dtype),
        grid_spec=pltpu.PrefetchScalarGridSpec(
            num_scalar_prefetch=0,
            grid=(B, rows_pad // tile),
            in_specs=[spec],
            out_specs=spec,
        ),
        compiler_params=pltpu.CompilerParams(
            dimension_semantics=("parallel", "parallel"),
            vmem_limit_bytes=32 * 1024 * 1024,
        ),
    )(x)

    out = out.reshape(B, C, n_pad)
    if n_pad != n:
        out = out[:, :, :n]
    return out.reshape(B, C, H, W)


def _extract_hand_ref(img):
    """Pure-JAX reference (mirrors kornia rgb_to_hsv + ExtractHand.forward),
    including the full hue computation, to validate the simplified kernel."""
    r, g, b = img[:, 0], img[:, 1], img[:, 2]
    maxc = jnp.maximum(jnp.maximum(r, g), b)
    minc = jnp.minimum(jnp.minimum(r, g), b)
    delta = maxc - minc
    v = maxc
    s = delta / (maxc + _EPS)
    deltac = jnp.where(delta == 0.0, 1.0, delta)
    rc, gc, bc = maxc - r, maxc - g, maxc - b
    h1 = bc - gc
    h2 = (rc - bc) + 2.0 * deltac
    h3 = (gc - rc) + 4.0 * deltac
    r_is_max = (r >= g) & (r >= b)
    g_is_max = jnp.logical_not(r_is_max) & (g >= b)
    h_num = jnp.where(r_is_max, h1, jnp.where(g_is_max, h2, h3))
    h_frac = h_num / deltac / 6.0
    h = _TWO_PI * (h_frac - jnp.floor(h_frac))
    in_h = (h >= _HSV_MIN[0]) & (h <= _HSV_MAX[0])
    in_s = (s >= _HSV_MIN[1]) & (s <= _HSV_MAX[1])
    in_v = (v >= _HSV_MIN[2]) & (v <= _HSV_MAX[2])
    mask = (in_h & in_s & in_v).astype(img.dtype)
    hand_mask = 1.0 - mask
    return img * hand_mask[:, None, :, :]


if __name__ == "__main__":
    key = jax.random.PRNGKey(0)
    k1, k2 = jax.random.split(key)

    # Small shape consistent with the module: batch=2, RGB, 16x16 spatial
    # (exercises the padded path: 256 pixels -> 8 rows of 128 with padding).
    img = jax.random.uniform(k1, (2, 3, 16, 16), dtype=jnp.float32)
    out = jax.block_until_ready(extract_hand(img))
    ref = _extract_hand_ref(img)
    assert out.shape == img.shape and out.dtype == img.dtype
    assert jnp.allclose(out, ref, atol=1e-5, rtol=1e-5), "mismatch vs reference (padded path)"

    # 32x32 -> 1024 pixels: exercises the zero-pad-free exact-divisor path.
    img2 = jax.random.uniform(k2, (1, 3, 32, 32), dtype=jnp.float32)
    out2 = jax.block_until_ready(extract_hand(img2))
    ref2 = _extract_hand_ref(img2)
    assert out2.shape == img2.shape and out2.dtype == img2.dtype
    assert jnp.allclose(out2, ref2, atol=1e-5, rtol=1e-5), "mismatch vs reference (exact path)"

    print("KERNEL_OK")
</pallas_src>

<mosaic_0001>
module attributes {stable_mosaic.version = 11 : i64} {
  func.func @_extract_hand_kernel(%arg0: i32, %arg1: i32, %arg2: memref<1x3x8x128xf32, #tpu.memory_space<vmem>>, %arg3: memref<1x3x8x128xf32, #tpu.memory_space<vmem>>) attributes {dimension_semantics = [#tpu.dimension_semantics<parallel>, #tpu.dimension_semantics<parallel>], iteration_bounds = array<i64: 2, 1>, scalar_prefetch = 0 : i64, scratch_operands = 0 : i64, tpu.core_type = #tpu.core_type<tc>, window_params = [{transform_indices = @transform_0, window_bounds = array<i64: 1, 3, 8, 128>}, {transform_indices = @transform_1, window_bounds = array<i64: 1, 3, 8, 128>}]} {
    %c0 = arith.constant 0 : index
    %c0_0 = arith.constant 0 : index
    %c0_1 = arith.constant 0 : index
    %c0_2 = arith.constant 0 : index
    %0 = vector.load %arg2[%c0, %c0_0, %c0_1, %c0_2] : memref<1x3x8x128xf32, #tpu.memory_space<vmem>>, vector<1x1x8x128xf32>
    %1 = vector.shape_cast %0 : vector<1x1x8x128xf32> to vector<8x128xf32>
    %c0_3 = arith.constant 0 : index
    %c1 = arith.constant 1 : index
    %c0_4 = arith.constant 0 : index
    %c0_5 = arith.constant 0 : index
    %2 = vector.load %arg2[%c0_3, %c1, %c0_4, %c0_5] : memref<1x3x8x128xf32, #tpu.memory_space<vmem>>, vector<1x1x8x128xf32>
    %3 = vector.shape_cast %2 : vector<1x1x8x128xf32> to vector<8x128xf32>
    %c0_6 = arith.constant 0 : index
    %c2 = arith.constant 2 : index
    %c0_7 = arith.constant 0 : index
    %c0_8 = arith.constant 0 : index
    %4 = vector.load %arg2[%c0_6, %c2, %c0_7, %c0_8] : memref<1x3x8x128xf32, #tpu.memory_space<vmem>>, vector<1x1x8x128xf32>
    %5 = vector.shape_cast %4 : vector<1x1x8x128xf32> to vector<8x128xf32>
    %6 = arith.maximumf %1, %3 : vector<8x128xf32>
    %7 = arith.maximumf %6, %5 : vector<8x128xf32>
    %8 = arith.minimumf %1, %3 : vector<8x128xf32>
    %9 = arith.minimumf %8, %5 : vector<8x128xf32>
    %10 = arith.subf %7, %9 : vector<8x128xf32>
    %cst = arith.constant 9.99999993E-9 : f32
    %11 = vector.broadcast %cst : f32 to vector<8x128xf32>
    %12 = arith.addf %7, %11 : vector<8x128xf32>
    %cst_9 = arith.constant 3.000000e-01 : f32
    %13 = vector.broadcast %cst_9 : f32 to vector<8x128xf32>
    %14 = arith.mulf %12, %13 : vector<8x128xf32>
    %15 = arith.cmpf ole, %10, %14 : vector<8x128xf32>
    %cst_10 = arith.constant 4.000000e-01 : f32
    %16 = vector.broadcast %cst_10 : f32 to vector<8x128xf32>
    %17 = arith.cmpf oge, %7, %16 : vector<8x128xf32>
    %cst_11 = arith.constant 1.000000e+00 : f32
    %18 = vector.broadcast %cst_11 : f32 to vector<8x128xf32>
    %19 = arith.cmpf ole, %7, %18 : vector<8x128xf32>
    %20 = arith.andi %17, %19 : vector<8x128xi1>
    %21 = arith.andi %15, %20 : vector<8x128xi1>
    %cst_12 = arith.constant 0.000000e+00 : f32
    %22 = vector.broadcast %cst_12 : f32 to vector<8x128xf32>
    %23 = arith.select %21, %22, %1 : vector<8x128xi1>, vector<8x128xf32>
    %c0_13 = arith.constant 0 : index
    %c0_14 = arith.constant 0 : index
    %c0_15 = arith.constant 0 : index
    %c0_16 = arith.constant 0 : index
    %24 = vector.load %arg3[%c0_13, %c0_14, %c0_15, %c0_16] : memref<1x3x8x128xf32, #tpu.memory_space<vmem>>, vector<1x1x8x128xf32>
    %25 = vector.shape_cast %24 : vector<1x1x8x128xf32> to vector<8x128xf32>
    %26 = vector.shape_cast %23 : vector<8x128xf32> to vector<1x1x8x128xf32>
    tpu.vector_store %arg3[%c0_13, %c0_14, %c0_15, %c0_16], %26 {strides = array<i32>} : memref<1x3x8x128xf32, #tpu.memory_space<vmem>>, vector<1x1x8x128xf32>,
    %cst_17 = arith.constant 0.000000e+00 : f32
    %27 = vector.broadcast %cst_17 : f32 to vector<8x128xf32>
    %28 = arith.select %21, %27, %3 : vector<8x128xi1>, vector<8x128xf32>
    %c0_18 = arith.constant 0 : index
    %c1_19 = arith.constant 1 : index
    %c0_20 = arith.constant 0 : index
    %c0_21 = arith.constant 0 : index
    %29 = vector.load %arg3[%c0_18, %c1_19, %c0_20, %c0_21] : memref<1x3x8x128xf32, #tpu.memory_space<vmem>>, vector<1x1x8x128xf32>
    %30 = vector.shape_cast %29 : vector<1x1x8x128xf32> to vector<8x128xf32>
    %31 = vector.shape_cast %28 : vector<8x128xf32> to vector<1x1x8x128xf32>
    tpu.vector_store %arg3[%c0_18, %c1_19, %c0_20, %c0_21], %31 {strides = array<i32>} : memref<1x3x8x128xf32, #tpu.memory_space<vmem>>, vector<1x1x8x128xf32>,
    %cst_22 = arith.constant 0.000000e+00 : f32
    %32 = vector.broadcast %cst_22 : f32 to vector<8x128xf32>
    %33 = arith.select %21, %32, %5 : vector<8x128xi1>, vector<8x128xf32>
    %c0_23 = arith.constant 0 : index
    %c2_24 = arith.constant 2 : index
    %c0_25 = arith.constant 0 : index
    %c0_26 = arith.constant 0 : index
    %34 = vector.load %arg3[%c0_23, %c2_24, %c0_25, %c0_26] : memref<1x3x8x128xf32, #tpu.memory_space<vmem>>, vector<1x1x8x128xf32>
    %35 = vector.shape_cast %34 : vector<1x1x8x128xf32> to vector<8x128xf32>
    %36 = vector.shape_cast %33 : vector<8x128xf32> to vector<1x1x8x128xf32>
    tpu.vector_store %arg3[%c0_23, %c2_24, %c0_25, %c0_26], %36 {strides = array<i32>} : memref<1x3x8x128xf32, #tpu.memory_space<vmem>>, vector<1x1x8x128xf32>,
    return
  }
  func.func @transform_0(%arg0: i32, %arg1: i32) -> (i32, i32, i32, i32) {
    %c0_i32 = arith.constant 0 : i32
    %c0_i32_0 = arith.constant 0 : i32
    %c0_i32_1 = arith.constant 0 : i32
    return %arg0, %c0_i32, %arg1, %c0_i32_0 : i32, i32, i32, i32
  }
  func.func @transform_1(%arg0: i32, %arg1: i32) -> (i32, i32, i32, i32) {
    %c0_i32 = arith.constant 0 : i32
    %c0_i32_0 = arith.constant 0 : i32
    %c0_i32_1 = arith.constant 0 : i32
    return %arg0, %c0_i32, %arg1, %c0_i32_0 : i32, i32, i32, i32
  }
}

</mosaic_0001>

<llo_original>
// kernel: tpu_custom_call.1
$region0: #{tpu_custom_call.1}
  #allocation0 [shape = 'u32[]', space=smem, size = 0x4, offset = 0x4, fixed_abs, tag = 'smem constant byte address 0x4 - core index']
  #allocation1 [shape = 'u32[144,128]{1,0:T(1,128)}', space=vmem, size = 0x12000, scoped, tag = 'internal scratch']
  %s0 = inlined_call_operand.hbm [shape: f32[2,3,8,128], index: 0, kind: input, shape index: {}]
  %s1 = inlined_call_operand.hbm [shape: f32[2,3,8,128], index: 1, kind: output, shape index: {}]
  %s2 = sld [smem:[#allocation0]]
  $region41: #{tpu_custom_call.1} parent=0
    _
  %s4 = ssub.s32 1, %s2
  %s5 = scalar_select 0, %s4, %s2
  $region1: #{tpu_custom_call.1} parent=0
    #allocation2 [shape = 'u8[24576]{0}', space=vmem, size = 0x6000, scoped, tag = 'input window, operand 0']
    #allocation3 [shape = 's32[2]{0}', space=sflag, size = 0x8, scoped, tag = 'scoped memory for tpu_custom_call.1']
    #allocation4 [shape = 's32[2]{0}', space=sflag, size = 0x8, scoped, tag = 'scoped memory for tpu_custom_call.1']
    #allocation5 [shape = 'u8[24576]{0}', space=vmem, size = 0x6000, scoped, tag = 'output window, operand 0']
    %6 = vsyncpa [#allocation3], 0
    %s7 = scalar_lea.sflag [#allocation3], 1
    %8 = vsyncpa %s7, 0
    %9 = vsyncpa [#allocation4], 0
    %s10 = scalar_lea.sflag [#allocation4], 1
    %11 = vsyncpa %s10, 0
    loop: start=0, step=1, limit=4
    $region2: #{tpu_custom_call.1} parent=1 // loop_pre_header
      _
    $region3: #{tpu_custom_call.1} parent=1 // loop_header
      %s13 = sphi 0, %s17
      %p14 = scmp.ge.s32.totalorder %s13, 4
      %s20 = sphi 0, %s32
      %s21 = sphi 0, %s28
      %s22 = sphi 0, %s20
      %s23 = sphi 0, %s21
      %s24 = sphi 0, %s22
      %s25 = sphi 0, %s23
      %s37 = sphi 0, %s39
      %s40 = sphi 0, %s37
      %s41 = sphi 0, %s40
      %s57 = sphi 0, %s41
      %s65 = sphi 0, %s67
      %s68 = sphi 0, %s65
      %s69 = sphi 0, %s68
      %s85 = sphi 0, %s69
    $region4: #{tpu_custom_call.1} parent=1 // loop_header_branch
      %16 = sbr.rel (%p14) target = $region8
    $region5: #{tpu_custom_call.1} parent=1 // loop_body
      %s18 = ssub.s32 %s13, 1
      %s19 = ssub.s32 %s13, 2
      %s26 = sadd.s32 1, %s21
      %p27 = scmp.ge.s32.totalorder %s26, 1
      %s28 = scalar_select %p27, 0, %s26
      %s29 = sadd.s32 1, %s20
      %s30 = scalar_select %p27, %s29, %s20
      %p31 = scmp.ge.s32.totalorder %s30, 2
      %s32 = scalar_select %p31, 0, %s30
      %s33 = ssub.s32 %s20, %s32
      %s34 = ssub.s32 %s21, %s28
      %s35 = sor.u32 %s33, %s34
      %p36 = scmp.eq.s32.totalorder %s35, 0
      %s38 = sadd.s32 %s37, 1
      %s39 = scalar_select %p36, %s37, %s38
      %p42 = pneg %p36
      %p43 = scmp.eq.s32.totalorder %s13, 1
      %p44 = por %p42, %p43
      %p45 = scmp.ne.s32.totalorder %s37, %s40
      %p46 = scmp.eq.s32.totalorder %s13, 0
      %p47 = por %p45, %p46
      %p48 = scmp.ne.s32.totalorder %s37, %s40
      %p49 = scmp.eq.s32.totalorder %s18, 1
      %p50 = por %p48, %p49
      %p51 = scmp.ne.s32.totalorder %s40, %s41
      %p52 = scmp.eq.s32.totalorder %s18, 0
      %p53 = por %p51, %p52
      %p54 = scmp.ne.s32.totalorder %s40, %s41
      %p55 = scmp.eq.s32.totalorder %s19, 1
      %p56 = por %p54, %p55
      %p58 = scmp.ne.s32.totalorder %s41, %s57
      %p59 = scmp.eq.s32.totalorder %s19, 0
      %p60 = por %p58, %p59
      %s61 = ssub.s32 %s20, %s32
      %s62 = ssub.s32 %s21, %s28
      %s63 = sor.u32 %s61, %s62
      %p64 = scmp.eq.s32.totalorder %s63, 0
      %s66 = sadd.s32 %s65, 1
      %s67 = scalar_select %p64, %s65, %s66
      %p70 = pneg %p64
      %p71 = scmp.eq.s32.totalorder %s13, 1
      %p72 = por %p70, %p71
      %p73 = scmp.ne.s32.totalorder %s65, %s68
      %p74 = scmp.eq.s32.totalorder %s13, 0
      %p75 = por %p73, %p74
      %p76 = scmp.ne.s32.totalorder %s65, %s68
      %p77 = scmp.eq.s32.totalorder %s18, 1
      %p78 = por %p76, %p77
      %p79 = scmp.ne.s32.totalorder %s68, %s69
      %p80 = scmp.eq.s32.totalorder %s18, 0
      %p81 = por %p79, %p80
      %p82 = scmp.ne.s32.totalorder %s68, %s69
      %p83 = scmp.eq.s32.totalorder %s19, 1
      %p84 = por %p82, %p83
      %p86 = scmp.ne.s32.totalorder %s69, %s85
      %p87 = scmp.eq.s32.totalorder %s19, 0
      %p88 = por %p86, %p87
      %p89 = scmp.le.s32.totalorder 1, %s13
      %p90 = scmp.lt.s32.totalorder %s13, 3
      %p91 = pnand %p89, %p90
      %p92 = pneg %p91
      // Predicated region
      $region9: #{tpu_custom_call.1} parent=5 // pred_check
        _
      $region10: #{tpu_custom_call.1} parent=5 // pred_check_branch
        %94 = sbr.rel (%p91) target = $region12
      $region11: #{tpu_custom_call.1} parent=5 // pred_region
        %s95 = ssub.s32 %s13, 1
      $region12: #{tpu_custom_call.1} parent=5 // pred_fallthru
        _
      %p96 = scmp.lt.s32.totalorder %s13, 2
      // Predicated region
      $region13: #{tpu_custom_call.1} parent=5 // pred_check
        %p97 = pneg %p96
      $region14: #{tpu_custom_call.1} parent=5 // pred_check_branch
        %99 = sbr.rel (%p97) target = $region16
      $region15: #{tpu_custom_call.1} parent=5 // pred_region
        // Predicated region
        $region17: #{tpu_custom_call.1} parent=15 // pred_check
          %p100 = pneg %p47
        $region18: #{tpu_custom_call.1} parent=15 // pred_check_branch
          %102 = sbr.rel (%p100) target = $region20
        $region19: #{tpu_custom_call.1} parent=15 // pred_region
          %s103 = sand.u32 %s37, 1
          %s104 = scalar_lea.sflag [#allocation3], %s103
          %s105 = sand.u32 %s37, 1
          %s106 = smul.addr %s105, 24
          %s107 = scalar_lea.vmem [#allocation2], %s106
          %s109 = ssub.s32 384, 384
          %110 = vsyncadd %s104, %s109
          %s111 = smul.addr %s20, 3
          %s112 = sadd.s32 %s21, %s111
          %s113 = smul.addr %s112, 128
          %s114 = scalar_lea.hbm %s0, %s113
          %s115 = sshll.u32 %s107, 4
          %s116 = int_to_ptr.vmem [resolvable:$true] %s115
          %121 = dma.hbm_to_vmem [thread:$0]  %s114, 384, %s116, %s104, 128, 128, 8
        $region20: #{tpu_custom_call.1} parent=15 // pred_fallthru
          _
      $region16: #{tpu_custom_call.1} parent=5 // pred_fallthru
        _
      %p122 = scmp.le.s32.totalorder 1, %s13
      %p123 = scmp.lt.s32.totalorder %s13, 3
      %p124 = pnand %p122, %p123
      %p125 = pneg %p124
      // Predicated region
      $region21: #{tpu_custom_call.1} parent=5 // pred_check
        _
      $region22: #{tpu_custom_call.1} parent=5 // pred_check_branch
        %127 = sbr.rel (%p124) target = $region24
      $region23: #{tpu_custom_call.1} parent=5 // pred_region
        %s128 = ssub.s32 %s13, 1
        %s129 = sand.u32 %s40, 1
        %s130 = scalar_lea.sflag [#allocation3], %s129
        %s131 = sand.u32 %s40, 1
        %s132 = smul.addr %s131, 24
        %s133 = scalar_lea.vmem [#allocation2], %s132
        // Predicated region
        $region25: #{tpu_custom_call.1} parent=23 // pred_check
          %p134 = pneg %p53
        $region26: #{tpu_custom_call.1} parent=23 // pred_check_branch
          %136 = sbr.rel (%p134) target = $region28
        $region27: #{tpu_custom_call.1} parent=23 // pred_region
          %137 = dma.done %s130, 384
        $region28: #{tpu_custom_call.1} parent=23 // pred_fallthru
          _
        %s138 = sand.u32 %s40, 1
        %s139 = scalar_lea.sflag [#allocation3], %s138
        %s140 = sand.u32 %s40, 1
        %s141 = smul.addr %s140, 24
        %s142 = scalar_lea.vmem [#allocation2], %s141
        %p143 = pneg %p53
        %p144 = pneg %p50
        %p145 = pneg %p81
        %p146 = pneg %p78
        %s147 = sand.u32 %s68, 1
        %s148 = scalar_lea.sflag [#allocation4], %s147
        %s149 = sand.u32 %s68, 1
        %s150 = smul.addr %s149, 24
        %s151 = scalar_lea.vmem [#allocation5], %s150
        %v152 = vld [vmem:[%s133] sm:$0xff]
        %s153 = scalar_lea.vmem %s133, 8 [#allocation2]
        %v154 = vld [vmem:[%s153] sm:$0xff]
        %s155 = scalar_lea.vmem %s133, 16 [#allocation2]
        %v156 = vld [vmem:[%s155] sm:$0xff]
        %v157 = vmax.f32 %v152, %v154
        %v158 = vmax.f32 %v157, %v156
        %v159 = vmin.f32 %v152, %v154
        %v160 = vmin.f32 %v159, %v156
        %v161 = vsub.f32 %v158, %v160
        %v162 = vadd.f32 %v158, 1e-08
        %v163 = vmul.f32 %v162, 0.3
        %vm164 = vcmp.le.f32.partialorder %v161, %v163
        %vm165 = vcmp.ge.f32.partialorder %v158, 0.4
        %vm166 = vcmp.le.f32.partialorder %v158, 1.0
        %vm167 = vmand %vm165, %vm166
        %vm168 = vmand %vm164, %vm167
        %v169 = vsel %vm168, 0.0, %v152
        %170 = vst [vmem:[%s151] sm:$0xff] %v169
        %v171 = vsel %vm168, 0.0, %v154
        %s172 = scalar_lea.vmem %s151, 8 [#allocation5]
        %173 = vst [vmem:[%s172] sm:$0xff] %v171
        %v174 = vsel %vm168, 0.0, %v156
        %s175 = scalar_lea.vmem %s151, 16 [#allocation5]
        %176 = vst [vmem:[%s175] sm:$0xff] %v174
        %s177 = sand.u32 %s68, 1
        %s178 = scalar_lea.sflag [#allocation4], %s177
        %s179 = sand.u32 %s68, 1
        %s180 = smul.addr %s179, 24
        %s181 = scalar_lea.vmem [#allocation5], %s180
        // Predicated region
        $region29: #{tpu_custom_call.1} parent=23 // pred_check
          %p182 = pneg %p78
        $region30: #{tpu_custom_call.1} parent=23 // pred_check_branch
          %184 = sbr.rel (%p182) target = $region32
        $region31: #{tpu_custom_call.1} parent=23 // pred_region
          %s186 = ssub.s32 384, 384
          %187 = vsyncadd %s178, %s186
          %s188 = smul.addr %s22, 3
          %s189 = sadd.s32 %s23, %s188
          %s190 = smul.addr %s189, 128
          %s191 = scalar_lea.hbm %s1, %s190
          %s192 = sshll.u32 %s181, 4
          %s193 = int_to_ptr.vmem [resolvable:$true] %s192
          %198 = dma.vmem_to_hbm [thread:$0]  %s193, 384, %s191, %s178, 128, 128, 8
        $region32: #{tpu_custom_call.1} parent=23 // pred_fallthru
          _
      $region24: #{tpu_custom_call.1} parent=5 // pred_fallthru
        _
      %p199 = scmp.le.s32.totalorder 2, %s13
      // Predicated region
      $region33: #{tpu_custom_call.1} parent=5 // pred_check
        %p200 = pneg %p199
      $region34: #{tpu_custom_call.1} parent=5 // pred_check_branch
        %202 = sbr.rel (%p200) target = $region36
      $region35: #{tpu_custom_call.1} parent=5 // pred_region
        %s203 = ssub.s32 %s13, 2
        // Predicated region
        $region37: #{tpu_custom_call.1} parent=35 // pred_check
          %p204 = pneg %p84
        $region38: #{tpu_custom_call.1} parent=35 // pred_check_branch
          %206 = sbr.rel (%p204) target = $region40
        $region39: #{tpu_custom_call.1} parent=35 // pred_region
          %s207 = sand.u32 %s69, 1
          %s208 = scalar_lea.sflag [#allocation4], %s207
          %s209 = sand.u32 %s69, 1
          %s210 = smul.addr %s209, 24
          %s211 = scalar_lea.vmem [#allocation5], %s210
          %212 = dma.done %s208, 384
        $region40: #{tpu_custom_call.1} parent=35 // pred_fallthru
          _
      $region36: #{tpu_custom_call.1} parent=5 // pred_fallthru
        _
    $region6: #{tpu_custom_call.1} parent=1 // loop_footer
      %s17 = sadd.s32 1, %s13
    $region7: #{tpu_custom_call.1} parent=1 // loop_footer_branch
      %12 = sbr.rel target = $region3
    $region8: #{tpu_custom_call.1} parent=1 // loop_exit
      _
    %213 = vsyncpa [#allocation3], 1
    %s214 = scalar_lea.sflag [#allocation3], 1
    %215 = vsyncpa %s214, 1
    %216 = vsyncpa [#allocation4], 1
    %s217 = scalar_lea.sflag [#allocation4], 1
    %218 = vsyncpa %s217, 1

</llo_original>
